<compile_context>
chip_gen: v7x
topology: tpu7x:2x2x1
jax: 0.10.0
libtpu: 0.0.40
codegen_flags: <defaults>
</compile_context>

<pallas_src>
import functools

import jax
import jax.numpy as jnp
from jax.experimental import pallas as pl
from jax.experimental.pallas import tpu as pltpu


def _musical_emb_kernel(x_ref, wf_ref, embf_ref, out_ref, *, num_tokens, num_feats):
    x = x_ref[...]                                  # [Nt, 1+F] float32
    ids = x[:, 0:1].astype(jnp.int32)               # [Nt, 1]  (trunc toward 0, like .int())
    ids = jnp.clip(ids, 0, num_tokens - 1)          # clamp-gather semantics
    feats = x[:, 1:1 + num_feats]                   # [Nt, F]

    n = x.shape[0]
    vpad = embf_ref.shape[0]                        # padded vocab (multiple of 128)

    # Embedding lookup as a one-hot matmul (MXU-friendly for small vocab).
    # TODO(synk): for V >> 128 switch to a scalar-prefetch / pl.Element row gather
    # instead of materializing an [Nt, Vpad] one-hot.
    onehot = (ids == jax.lax.broadcasted_iota(jnp.int32, (n, vpad), 1)).astype(
        jnp.float32)
    te = jnp.dot(onehot, embf_ref[...], preferred_element_type=jnp.float32)

    # Fused feature path: [Nt, F] @ [F, Hpad]
    fe = jnp.dot(feats, wf_ref[...], preferred_element_type=jnp.float32)

    out_ref[...] = fe + te


@functools.partial(jax.jit, static_argnames=("tile_n",))
def musical_embeddings(input_sequence, params, *, tile_n=512):
    """Pallas implementation of MusicalEmbeddings.forward.

    input_sequence: [B, S, 7] (col 0 = token id, cols 1:7 = 6 float features)
    returns: [B, S, H] float32
    """
    B, S, C = input_sequence.shape
    N = B * S

    emb = params["emb"].astype(jnp.float32)   # [V, H]
    w1 = params["w1"].astype(jnp.float32)     # [H, F]
    b1 = params["b1"].astype(jnp.float32)     # [H]
    wc = params["wc"].astype(jnp.float32)     # [H, 2H]
    bc = params["bc"].astype(jnp.float32)     # [H]

    V, H = emb.shape
    F = w1.shape[1]

    # ---- Fold the two linear layers (exact linear composition, done once in XLA) ----
    hi = jax.lax.Precision.HIGHEST
    wc1 = wc[:, :H]                                            # applies to feature_emb
    wc2 = wc[:, H:]                                            # applies to token_emb
    w_fused = jnp.dot(w1.T, wc1.T, precision=hi)               # [F, H]
    b_fused = jnp.dot(b1[None, :], wc1.T, precision=hi) + bc   # [1, H]
    emb_fused = jnp.dot(emb, wc2.T, precision=hi) + b_fused    # [V, H]  (bias folded in)

    # ---- Lane-dense padding: H and V up to multiples of 128 ----
    Hpad = max(128, ((H + 127) // 128) * 128)
    Vpad = max(128, ((V + 127) // 128) * 128)
    w_fused_p = jnp.zeros((F, Hpad), jnp.float32).at[:, :H].set(w_fused)
    emb_fused_p = jnp.zeros((Vpad, Hpad), jnp.float32).at[:V, :H].set(emb_fused)

    # ---- Row input: flatten [B,S,C] -> [N,C]; pad N to a tile multiple ----
    x = input_sequence.astype(jnp.float32).reshape(N, C)

    tile = min(tile_n, ((N + 7) // 8) * 8)          # keep sublane-aligned, avoid over-padding
    Npad = ((N + tile - 1) // tile) * tile
    if Npad != N:
        x = jnp.pad(x, ((0, Npad - N), (0, 0)))     # padded rows: id=0 (valid), sliced off below

    grid = (Npad // tile,)
    kernel = functools.partial(_musical_emb_kernel, num_tokens=V, num_feats=F)

    out = pl.pallas_call(
        kernel,
        out_shape=jax.ShapeDtypeStruct((Npad, Hpad), jnp.float32),
        grid_spec=pltpu.PrefetchScalarGridSpec(
            num_scalar_prefetch=0,
            grid=grid,
            in_specs=[
                pl.BlockSpec((tile, C), lambda i: (i, 0)),       # raw rows (id + feats)
                pl.BlockSpec((F, Hpad), lambda i: (0, 0)),       # fused feature weight
                pl.BlockSpec((Vpad, Hpad), lambda i: (0, 0)),    # fused emb table (+bias)
            ],
            out_specs=pl.BlockSpec((tile, Hpad), lambda i: (i, 0)),
        ),
        compiler_params=pltpu.CompilerParams(
            dimension_semantics=("parallel",)),
    )(x, w_fused_p, emb_fused_p)

    return out[:N, :H].reshape(B, S, H)


def reference(input_sequence, params):
    """Unfused pure-JAX reference mirroring the PyTorch forward."""
    ids = input_sequence[:, :, 0].astype(jnp.int32)
    feats = input_sequence[:, :, 1:7].astype(jnp.float32)
    fe = feats @ params["w1"].T + params["b1"]
    te = params["emb"][ids]
    cat = jnp.concatenate([fe, te], axis=-1)
    return cat @ params["wc"].T + params["bc"]


if __name__ == "__main__":
    # num_dif_tokens=16, num_features_per_token=6, hidden_size=32
    B, S, H, V, F = 2, 8, 32, 16, 6
    key = jax.random.PRNGKey(0)
    k1, k2, k3, k4, k5, k6, k7 = jax.random.split(key, 7)

    params = {
        "emb": jax.random.normal(k1, (V, H), jnp.float32) * 0.02,
        "w1":  jax.random.normal(k2, (H, F), jnp.float32) * 0.1,
        "b1":  jax.random.normal(k3, (H,), jnp.float32) * 0.01,
        "wc":  jax.random.normal(k4, (H, 2 * H), jnp.float32) * 0.1,
        "bc":  jax.random.normal(k5, (H,), jnp.float32) * 0.01,
    }

    tok = jax.random.randint(k6, (B, S, 1), 0, V).astype(jnp.float32)
    feat = jax.random.normal(k7, (B, S, F), jnp.float32)
    x = jnp.concatenate([tok, feat], axis=-1)   # [B, S, 7]

    out = musical_embeddings(x, params)
    out = jax.block_until_ready(out)

    ref = reference(x, params)
    assert out.shape == (B, S, H)
    # Folded linears reorder f32 rounding slightly vs the unfused reference.
    assert jnp.allclose(out, ref, atol=1e-4, rtol=1e-4), float(
        jnp.max(jnp.abs(out - ref)))
    print("KERNEL_OK")
</pallas_src>

<mosaic_0001>
module attributes {stable_mosaic.version = 11 : i64} {
  func.func @_musical_emb_kernel(%arg0: i32, %arg1: memref<16x7xf32, #tpu.memory_space<vmem>>, %arg2: memref<6x128xf32, #tpu.memory_space<vmem>>, %arg3: memref<128x128xf32, #tpu.memory_space<vmem>>, %arg4: memref<16x128xf32, #tpu.memory_space<vmem>>) attributes {dimension_semantics = [#tpu.dimension_semantics<parallel>], iteration_bounds = array<i64: 1>, scalar_prefetch = 0 : i64, scratch_operands = 0 : i64, tpu.core_type = #tpu.core_type<tc>, window_params = [{transform_indices = @transform_0, window_bounds = array<i64: 16, 7>}, {pipeline_mode = #tpu.pipeline_mode<synchronous>, transform_indices = @transform_1, window_bounds = array<i64: 6, 128>}, {pipeline_mode = #tpu.pipeline_mode<synchronous>, transform_indices = @transform_2, window_bounds = array<i64: 128, 128>}, {transform_indices = @transform_3, window_bounds = array<i64: 16, 128>}]} {
    %c0 = arith.constant 0 : index
    %c0_0 = arith.constant 0 : index
    %0 = vector.load %arg1[%c0, %c0_0] : memref<16x7xf32, #tpu.memory_space<vmem>>, vector<16x7xf32>
    %1 = vector.extract_strided_slice %0 {offsets = [0, 0], sizes = [16, 1], strides = [1, 1]} : vector<16x7xf32> to vector<16x1xf32>
    %2 = arith.fptosi %1 : vector<16x1xf32> to vector<16x1xi32>
    %c0_i32 = arith.constant 0 : i32
    %c15_i32 = arith.constant 15 : i32
    %3 = vector.broadcast %c0_i32 : i32 to vector<16x1xi32>
    %4 = arith.maxsi %3, %2 : vector<16x1xi32>
    %5 = vector.broadcast %c15_i32 : i32 to vector<16x1xi32>
    %6 = arith.minsi %5, %4 : vector<16x1xi32>
    %7 = vector.extract_strided_slice %0 {offsets = [0, 1], sizes = [16, 6], strides = [1, 1]} : vector<16x7xf32> to vector<16x6xf32>
    %8 = tpu.iota {dimensions = array<i32: 1>} : vector<16x128xi32>
    %9 = vector.broadcast %6 : vector<16x1xi32> to vector<16x128xi32>
    %10 = arith.cmpi eq, %9, %8 : vector<16x128xi32>
    %11 = arith.extui %10 : vector<16x128xi1> to vector<16x128xi32>
    %12 = arith.sitofp %11 : vector<16x128xi32> to vector<16x128xf32>
    %c0_1 = arith.constant 0 : index
    %c0_2 = arith.constant 0 : index
    %13 = vector.load %arg3[%c0_1, %c0_2] : memref<128x128xf32, #tpu.memory_space<vmem>>, vector<128x128xf32>
    %cst = arith.constant dense<0.000000e+00> : vector<16x128xf32>
    %14 = tpu.matmul %12, %13, %cst {dimension_numbers = #tpu.dot_dimension_numbers<[1], [0], [0], [1], [0, 0, 1, 1], [], []>} : vector<16x128xf32>, vector<128x128xf32>, vector<16x128xf32> -> vector<16x128xf32>
    %c0_3 = arith.constant 0 : index
    %c0_4 = arith.constant 0 : index
    %15 = vector.load %arg2[%c0_3, %c0_4] : memref<6x128xf32, #tpu.memory_space<vmem>>, vector<6x128xf32>
    %cst_5 = arith.constant dense<0.000000e+00> : vector<16x128xf32>
    %16 = tpu.matmul %7, %15, %cst_5 {dimension_numbers = #tpu.dot_dimension_numbers<[1], [0], [0], [1], [0, 0, 1, 1], [], []>} : vector<16x6xf32>, vector<6x128xf32>, vector<16x128xf32> -> vector<16x128xf32>
    %17 = arith.addf %16, %14 : vector<16x128xf32>
    %c0_6 = arith.constant 0 : index
    %c0_7 = arith.constant 0 : index
    %18 = vector.load %arg4[%c0_6, %c0_7] : memref<16x128xf32, #tpu.memory_space<vmem>>, vector<16x128xf32>
    tpu.vector_store %arg4[%c0_6, %c0_7], %17 {strides = array<i32>} : memref<16x128xf32, #tpu.memory_space<vmem>>, vector<16x128xf32>,
    return
  }
  func.func @transform_0(%arg0: i32) -> (i32, i32) {
    %c0_i32 = arith.constant 0 : i32
    %c0_i32_0 = arith.constant 0 : i32
    return %arg0, %c0_i32 : i32, i32
  }
  func.func @transform_1(%arg0: i32) -> (i32, i32) {
    %c0_i32 = arith.constant 0 : i32
    %c0_i32_0 = arith.constant 0 : i32
    %c0_i32_1 = arith.constant 0 : i32
    return %c0_i32, %c0_i32_0 : i32, i32
  }
  func.func @transform_2(%arg0: i32) -> (i32, i32) {
    %c0_i32 = arith.constant 0 : i32
    %c0_i32_0 = arith.constant 0 : i32
    %c0_i32_1 = arith.constant 0 : i32
    return %c0_i32, %c0_i32_0 : i32, i32
  }
  func.func @transform_3(%arg0: i32) -> (i32, i32) {
    %c0_i32 = arith.constant 0 : i32
    %c0_i32_0 = arith.constant 0 : i32
    return %arg0, %c0_i32 : i32, i32
  }
}

</mosaic_0001>

<llo_original>
// kernel: musical_embeddings.1
$region0: #{musical_embeddings.1}
  #allocation0 [shape = 'u32[]', space=smem, size = 0x4, offset = 0x4, fixed_abs, tag = 'smem constant byte address 0x4 - core index']
  #allocation1 [shape = 'u32[144,128]{1,0:T(1,128)}', space=vmem, size = 0x12000, scoped, tag = 'internal scratch']
  %s0 = inlined_call_operand.vmem [shape: f32[16,7], index: 0, kind: input, shape index: {}]
  %s1 = inlined_call_operand.vmem [shape: f32[6,128], index: 1, kind: input, shape index: {}]
  %s2 = inlined_call_operand.vmem [shape: f32[128,128], index: 2, kind: input, shape index: {}]
  %s3 = inlined_call_operand.vmem [shape: f32[16,128], index: 3, kind: output, shape index: {}]
  %s4 = sld [smem:[#allocation0]]
  $region22: #{musical_embeddings.1} parent=0
    _
  %s6 = ssub.s32 1, %s4
  %s7 = scalar_select 0, %s6, %s4
  // Predicated region
  $region2: #{musical_embeddings.1} parent=0 // pred_check
    _
  $region3: #{musical_embeddings.1} parent=0 // pred_check_branch
    %9 = sbr.rel (0) target = $region5
  $region4: #{musical_embeddings.1} parent=0 // pred_region
    _
  $region5: #{musical_embeddings.1} parent=0 // pred_fallthru
    _
  // Predicated region
  $region6: #{musical_embeddings.1} parent=0 // pred_check
    _
  $region7: #{musical_embeddings.1} parent=0 // pred_check_branch
    %11 = sbr.rel (0) target = $region9
  $region8: #{musical_embeddings.1} parent=0 // pred_region
    _
  $region9: #{musical_embeddings.1} parent=0 // pred_fallthru
    _
  // Predicated region
  $region10: #{musical_embeddings.1} parent=0 // pred_check
    _
  $region11: #{musical_embeddings.1} parent=0 // pred_check_branch
    %13 = sbr.rel (0) target = $region13
  $region12: #{musical_embeddings.1} parent=0 // pred_region
    _
  $region13: #{musical_embeddings.1} parent=0 // pred_fallthru
    _
  %v14 = vld [vmem:[%s0] sm:$0xff]
  %v15 = vld [vmem:[%s0 + $0x8] sm:$0xff]
  %v16 = vcvt.f32.s32.to.zero.pseudo %v14
  %v17 = vcvt.f32.s32.to.zero.pseudo %v15
  %vm18 = vcmp.gt.s32.totalorder %v16, 0
  %v19 = vsel %vm18, %v16, 0
  %vm20 = vcmp.gt.s32.totalorder %v17, 0
  %v21 = vsel %vm20, %v17, 0
  %vm22 = vcmp.lt.s32.totalorder %v19, 15
  %v23 = vsel %vm22, %v19, 15
  %vm24 = vcmp.lt.s32.totalorder %v21, 15
  %v25 = vsel %vm24, %v21, 15
  %v26 = vlaneseq
  %v27 = vand.u32 %v26, 127
  %28 = vset.pattern.permute.xlu0 0
  %29 = vperm.xlu0 %28, %v23
  %v30 = vpop.permute.xlu0 %29
  %31 = vset.pattern.permute.xlu0 0
  %32 = vperm.xlu0 %31, %v25
  %v33 = vpop.permute.xlu0 %32
  %vm34 = vcmp.eq.s32.totalorder %v30, %v27
  %vm35 = vcmp.eq.s32.totalorder %v33, %v27
  %v36 = vsel %vm34, 1, 0
  %v37 = vsel %vm35, 1, 0
  %v38 = vcvt.s32.f32 %v36
  %v39 = vcvt.s32.f32 %v37
  %v40 = vld [vmem:[%s2] sm:$0xff]
  %v41 = vld [vmem:[%s2 + $0x8] sm:$0xff]
  %v42 = vld [vmem:[%s2 + $0x10] sm:$0xff]
  %v43 = vld [vmem:[%s2 + $0x18] sm:$0xff]
  %v44 = vld [vmem:[%s2 + $0x20] sm:$0xff]
  %v45 = vld [vmem:[%s2 + $0x28] sm:$0xff]
  %v46 = vld [vmem:[%s2 + $0x30] sm:$0xff]
  %v47 = vld [vmem:[%s2 + $0x38] sm:$0xff]
  %v48 = vld [vmem:[%s2 + $0x40] sm:$0xff]
  %v49 = vld [vmem:[%s2 + $0x48] sm:$0xff]
  %v50 = vld [vmem:[%s2 + $0x50] sm:$0xff]
  %v51 = vld [vmem:[%s2 + $0x58] sm:$0xff]
  %v52 = vld [vmem:[%s2 + $0x60] sm:$0xff]
  %v53 = vld [vmem:[%s2 + $0x68] sm:$0xff]
  %v54 = vld [vmem:[%s2 + $0x70] sm:$0xff]
  %v55 = vld [vmem:[%s2 + $0x78] sm:$0xff]
  %56 = vmatprep.subr.mxu0 0.0
  %57 = vmatpush1.msra.mxu0 %v40
  %58 = vmatprep.subr.mxu0 0.0
  %59 = vmatpush1.msra.mxu0 %v41
  %60 = vmatprep.subr.mxu0 0.0
  %61 = vmatpush1.msra.mxu0 %v42
  %62 = vmatprep.subr.mxu0 0.0
  %63 = vmatpush1.msra.mxu0 %v43
  %64 = vmatprep.subr.mxu0 0.0
  %65 = vmatpush1.msra.mxu0 %v44
  %66 = vmatprep.subr.mxu0 0.0
  %67 = vmatpush1.msra.mxu0 %v45
  %68 = vmatprep.subr.mxu0 0.0
  %69 = vmatpush1.msra.mxu0 %v46
  %70 = vmatprep.subr.mxu0 0.0
  %71 = vmatpush1.msra.mxu0 %v47
  %72 = vmatprep.subr.mxu0 0.0
  %73 = vmatpush1.msra.mxu0 %v48
  %74 = vmatprep.subr.mxu0 0.0
  %75 = vmatpush1.msra.mxu0 %v49
  %76 = vmatprep.subr.mxu0 0.0
  %77 = vmatpush1.msra.mxu0 %v50
  %78 = vmatprep.subr.mxu0 0.0
  %79 = vmatpush1.msra.mxu0 %v51
  %80 = vmatprep.subr.mxu0 0.0
  %81 = vmatpush1.msra.mxu0 %v52
  %82 = vmatprep.subr.mxu0 0.0
  %83 = vmatpush1.msra.mxu0 %v53
  %84 = vmatprep.subr.mxu0 0.0
  %85 = vmatpush1.msra.mxu0 %v54
  %86 = vmatprep.subr.mxu0 0.0
  %87 = vmatpush1.msra.mxu0 %v55
  %88 = vmatprep.subr.mxu0 0.0
  %89 = vmatpush1.msra.mxu0 0.0
  %90 = vmatprep.subr.mxu0 0.0
  %91 = vmatpush1.msra.mxu0 0.0
  %92 = vmatprep.subr.mxu0 0.0
  %93 = vmatpush1.msra.mxu0 0.0
  %94 = vmatprep.subr.mxu0 0.0
  %95 = vmatpush1.msra.mxu0 0.0
  %96 = vmatprep.subr.mxu0 0.0
  %97 = vmatpush1.msra.mxu0 0.0
  %98 = vmatprep.subr.mxu0 0.0
  %99 = vmatpush1.msra.mxu0 0.0
  %100 = vmatprep.subr.mxu0 0.0
  %101 = vmatpush1.msra.mxu0 0.0
  %102 = vmatprep.subr.mxu0 0.0
  %103 = vmatpush1.msra.mxu0 0.0
  %104 = vmatprep.subr.mxu0 0.0
  %105 = vmatpush1.msra.mxu0 0.0
  %106 = vmatprep.subr.mxu0 0.0
  %107 = vmatpush1.msra.mxu0 0.0
  %108 = vmatprep.subr.mxu0 0.0
  %109 = vmatpush1.msra.mxu0 0.0
  %110 = vmatprep.subr.mxu0 0.0
  %111 = vmatpush1.msra.mxu0 0.0
  %112 = vmatprep.subr.mxu0 0.0
  %113 = vmatpush1.msra.mxu0 0.0
  %114 = vmatprep.subr.mxu0 0.0
  %115 = vmatpush1.msra.mxu0 0.0
  %116 = vmatprep.subr.mxu0 0.0
  %117 = vmatpush1.msra.mxu0 0.0
  %118 = vmatprep.subr.mxu0 0.0
  %119 = vmatpush1.msra.mxu0 0.0
  %120 = vmatprep.mubr.f32.mxu0 0.0
  %121 = vmatmul.mubr.f32.gmra.mrb[0].mxu0 %v38
  %v122 = vpop.f32.mrb[0].mxu0
  %v123 = vadd.f32 0.0, %v122
  %v124 = vpop.f32.mrb[0].mxu0
  %125 = vmatprep.mubr.f32.mxu0 0.0
  %126 = vmatmul.mubr.f32.gmra.mrb[0].mxu0 %v39
  %v127 = vpop.f32.mrb[0].mxu0
  %v128 = vadd.f32 0.0, %v127
  %v129 = vpop.f32.mrb[0].mxu0
  %130 = vdwg.mxu0
  %v131 = vld [vmem:[%s1] sm:$0x3f]
  %134 = vrot.lane.b32.xlu0 %v14, 127
  %v135 = vpop.permute.xlu0 %134
  %136 = vrot.lane.b32.xlu0 %v15, 127
  %v137 = vpop.permute.xlu0 %136
  %vm138 = vcmask 48128
  %v139 = vsel %vm138, %v135, 0
  %v141 = vsel %vm138, %v137, 0
  %vm143 = vcmask 1045504
  %v145 = vsel %vm143, %v131, 0
  %147 = vmatprep.subr.mxu0 0.0
  %148 = vmatpush1.msra.mxu0 %v145
  %149 = vmatprep.subr.mxu0 0.0
  %150 = vmatpush1.msra.mxu0 0.0
  %151 = vmatprep.subr.mxu0 0.0
  %152 = vmatpush1.msra.mxu0 0.0
  %153 = vmatprep.subr.mxu0 0.0
  %154 = vmatpush1.msra.mxu0 0.0
  %155 = vmatprep.subr.mxu0 0.0
  %156 = vmatpush1.msra.mxu0 0.0
  %157 = vmatprep.subr.mxu0 0.0
  %158 = vmatpush1.msra.mxu0 0.0
  %159 = vmatprep.subr.mxu0 0.0
  %160 = vmatpush1.msra.mxu0 0.0
  %161 = vmatprep.subr.mxu0 0.0
  %162 = vmatpush1.msra.mxu0 0.0
  %163 = vmatprep.subr.mxu0 0.0
  %164 = vmatpush1.msra.mxu0 0.0
  %165 = vmatprep.subr.mxu0 0.0
  %166 = vmatpush1.msra.mxu0 0.0
  %167 = vmatprep.subr.mxu0 0.0
  %168 = vmatpush1.msra.mxu0 0.0
  %169 = vmatprep.subr.mxu0 0.0
  %170 = vmatpush1.msra.mxu0 0.0
  %171 = vmatprep.subr.mxu0 0.0
  %172 = vmatpush1.msra.mxu0 0.0
  %173 = vmatprep.subr.mxu0 0.0
  %174 = vmatpush1.msra.mxu0 0.0
  %175 = vmatprep.subr.mxu0 0.0
  %176 = vmatpush1.msra.mxu0 0.0
  %177 = vmatprep.subr.mxu0 0.0
  %178 = vmatpush1.msra.mxu0 0.0
  %179 = vmatprep.subr.mxu0 0.0
  %180 = vmatpush1.msra.mxu0 0.0
  %181 = vmatprep.subr.mxu0 0.0
  %182 = vmatpush1.msra.mxu0 0.0
  %183 = vmatprep.subr.mxu0 0.0
  %184 = vmatpush1.msra.mxu0 0.0
  %185 = vmatprep.subr.mxu0 0.0
  %186 = vmatpush1.msra.mxu0 0.0
  %187 = vmatprep.subr.mxu0 0.0
  %188 = vmatpush1.msra.mxu0 0.0
  %189 = vmatprep.subr.mxu0 0.0
  %190 = vmatpush1.msra.mxu0 0.0
  %191 = vmatprep.subr.mxu0 0.0
  %192 = vmatpush1.msra.mxu0 0.0
  %193 = vmatprep.subr.mxu0 0.0
  %194 = vmatpush1.msra.mxu0 0.0
  %195 = vmatprep.subr.mxu0 0.0
  %196 = vmatpush1.msra.mxu0 0.0
  %197 = vmatprep.subr.mxu0 0.0
  %198 = vmatpush1.msra.mxu0 0.0
  %199 = vmatprep.subr.mxu0 0.0
  %200 = vmatpush1.msra.mxu0 0.0
  %201 = vmatprep.subr.mxu0 0.0
  %202 = vmatpush1.msra.mxu0 0.0
  %203 = vmatprep.subr.mxu0 0.0
  %204 = vmatpush1.msra.mxu0 0.0
  %205 = vmatprep.subr.mxu0 0.0
  %206 = vmatpush1.msra.mxu0 0.0
  %207 = vmatprep.subr.mxu0 0.0
  %208 = vmatpush1.msra.mxu0 0.0
  %209 = vmatprep.subr.mxu0 0.0
  %210 = vmatpush1.msra.mxu0 0.0
  %211 = vmatprep.mubr.f32.mxu0 0.0
  %212 = vmatmul.mubr.f32.gmra.mrb[0].mxu0 %v139
  %v213 = vpop.f32.mrb[0].mxu0
  %v214 = vadd.f32 %v123, %v213
  %v215 = vpop.f32.mrb[0].mxu0
  %216 = vmatprep.mubr.f32.mxu0 0.0
  %217 = vmatmul.mubr.f32.gmra.mrb[0].mxu0 %v141
  %v218 = vpop.f32.mrb[0].mxu0
  %v219 = vadd.f32 %v128, %v218
  %v220 = vpop.f32.mrb[0].mxu0
  %221 = vdwg.mxu0
  %222 = vst [vmem:[%s3] sm:$0xff] %v214
  %223 = vst [vmem:[%s3 + $0x8] sm:$0xff] %v219
  // Predicated region
  $region14: #{musical_embeddings.1} parent=0 // pred_check
    _
  $region15: #{musical_embeddings.1} parent=0 // pred_check_branch
    %225 = sbr.rel (0) target = $region17
  $region16: #{musical_embeddings.1} parent=0 // pred_region
    _
  $region17: #{musical_embeddings.1} parent=0 // pred_fallthru
    _
  // Predicated region
  $region18: #{musical_embeddings.1} parent=0 // pred_check
    _
  $region19: #{musical_embeddings.1} parent=0 // pred_check_branch
    %227 = sbr.rel (0) target = $region21
  $region20: #{musical_embeddings.1} parent=0 // pred_region
    _
  $region21: #{musical_embeddings.1} parent=0 // pred_fallthru
    _

</llo_original>
